<compile_context>
chip_gen: v5e
topology: v5e:2x2
jax: 0.10.0
libtpu: 0.0.40
codegen_flags: <defaults>
</compile_context>

<pallas_src>
import functools

import jax
import jax.numpy as jnp
from jax.experimental import pallas as pl
from jax.experimental.pallas import tpu as pltpu

# (p1, p2, p3, p4) from the PyTorch module.
DROPOUT_PS = (0.81, 0.9, 0.9, 0.81)

# Layer widths from the PyTorch module, and their lane/sublane-padded forms.
DIMS = (29, 256, 64, 32, 30)
PAD_DIMS = (32, 256, 128, 128, 128)


def _round_up(n, m):
    return ((n + m - 1) // m) * m


def _pad2d(a, rows, cols):
    out = jnp.zeros((rows, cols), a.dtype)
    return out.at[: a.shape[0], : a.shape[1]].set(a)


def mlp_kernel(*refs, training):
    if training:
        seed_ref = refs[0]
        refs = refs[1:]
    (x_ref,
     w1_ref, b1_ref,
     w2_ref, b2_ref,
     w3_ref, b3_ref,
     w4_ref, b4_ref,
     o_ref) = refs

    if training:
        # Per-tile seed: different batch tiles get independent PRNG streams.
        pltpu.prng_seed(seed_ref[0] + pl.program_id(0))

    def layer(h, w_ref, b_ref, p):
        # Linear (MXU) + bias + ReLU (VPU); inverted dropout if training.
        y = jnp.dot(h, w_ref[...], preferred_element_type=jnp.float32)
        y = jnp.maximum(y + b_ref[...], 0.0)
        if training:
            bits = pltpu.bitcast(pltpu.prng_random_bits(y.shape), jnp.uint32)
            # keep-probability = 1 - p (same convention as torch Dropout).
            thresh = jnp.uint32(min(int(round(p * (2 ** 32))), 2 ** 32 - 1))
            keep = bits >= thresh
            y = jnp.where(keep, y * (1.0 / (1.0 - p)), 0.0)
        return y

    h = x_ref[...]
    h = layer(h, w1_ref, b1_ref, DROPOUT_PS[0])
    h = layer(h, w2_ref, b2_ref, DROPOUT_PS[1])
    h = layer(h, w3_ref, b3_ref, DROPOUT_PS[2])
    h = layer(h, w4_ref, b4_ref, DROPOUT_PS[3])
    o_ref[...] = h.astype(o_ref.dtype)


def mlp_forward(x, params, *, seed=0, training=False, block_batch=512):
    """x: (batch, 29) float32. params: list of 4 (W_(in,out), b_(out,))."""
    batch, in_dim = x.shape
    assert in_dim == DIMS[0]

    # Batch tile: multiple of 8 sublanes, capped so VMEM stays well under the
    # v7x 64 MiB / default scoped limits even with double-buffering.
    tb = min(block_batch, _round_up(batch, 8))
    padded_batch = _round_up(batch, tb)
    grid = (padded_batch // tb,)

    # Pad activations / parameters to lane-dense shapes (zeros are harmless:
    # padded weight rows/cols and bias entries are 0, so padded output
    # columns stay exactly 0 through ReLU and dropout).
    xp = jnp.zeros((padded_batch, PAD_DIMS[0]), jnp.float32)
    xp = xp.at[:batch, :in_dim].set(x)

    padded_params = []
    for li, (w, b) in enumerate(params):
        wp = _pad2d(w, PAD_DIMS[li], PAD_DIMS[li + 1])
        bp = _pad2d(b.reshape(1, -1), 1, PAD_DIMS[li + 1])
        padded_params.append((wp, bp))

    # BlockSpecs: stream x/out over the batch grid; keep weights resident.
    x_spec = pl.BlockSpec((tb, PAD_DIMS[0]), lambda i: (i, 0))
    out_spec = pl.BlockSpec((tb, PAD_DIMS[-1]), lambda i: (i, 0))
    param_specs = []
    for wp, bp in padded_params:
        param_specs.append(pl.BlockSpec(wp.shape, lambda i: (0, 0)))
        param_specs.append(pl.BlockSpec(bp.shape, lambda i: (0, 0)))

    in_specs = []
    args = []
    if training:
        in_specs.append(pl.BlockSpec(memory_space=pltpu.MemorySpace.SMEM))
        args.append(jnp.array([seed], dtype=jnp.int32))
    in_specs.append(x_spec)
    args.append(xp)
    in_specs.extend(param_specs)
    for wp, bp in padded_params:
        args.extend([wp, bp])

    flops = 2 * padded_batch * sum(
        PAD_DIMS[i] * PAD_DIMS[i + 1] for i in range(4))
    param_bytes = sum(int(wp.size + bp.size) for wp, bp in padded_params) * 4
    bytes_accessed = 4 * padded_batch * (PAD_DIMS[0] + PAD_DIMS[-1]) + param_bytes

    out_padded = pl.pallas_call(
        functools.partial(mlp_kernel, training=training),
        out_shape=jax.ShapeDtypeStruct((padded_batch, PAD_DIMS[-1]),
                                       jnp.float32),
        grid=grid,
        in_specs=in_specs,
        out_specs=out_spec,
        compiler_params=pltpu.CompilerParams(
            dimension_semantics=("parallel",)),
        cost_estimate=pl.CostEstimate(flops=flops, transcendentals=0,
                                      bytes_accessed=bytes_accessed),
    )(*args)

    return out_padded[:batch, :DIMS[-1]]


def make_params(key):
    """Deterministic init (same shapes/convention as nn.Linear, W transposed)."""
    params = []
    for i in range(len(DIMS) - 1):
        fan_in, fan_out = DIMS[i], DIMS[i + 1]
        key, kw, kb = jax.random.split(key, 3)
        bound = 1.0 / (fan_in ** 0.5)
        w = jax.random.uniform(kw, (fan_in, fan_out), jnp.float32, -bound, bound)
        b = jax.random.uniform(kb, (fan_out,), jnp.float32, -bound, bound)
        params.append((w, b))
    return params


def reference_eval(x, params):
    """Pure-JAX eval-mode reference (dropout = identity)."""
    h = x
    for w, b in params:
        h = jnp.maximum(h @ w + b, 0.0)
    return h


if __name__ == "__main__":
    key = jax.random.PRNGKey(0)
    key, kx = jax.random.split(key)

    batch = 8
    x = jax.random.normal(kx, (batch, DIMS[0]), jnp.float32)
    params = make_params(key)

    # Eval-mode forward (deterministic): dropout layers are identity.
    out = jax.block_until_ready(mlp_forward(x, params, training=False))
    ref = reference_eval(x, params)
    assert out.shape == (batch, DIMS[-1])
    assert jnp.allclose(out, ref, atol=1e-4, rtol=1e-4), "mismatch vs reference"

    # Training mode uses the TPU hardware PRNG; only exercise it on real TPU.
    if jax.default_backend() == "tpu":
        out_train = jax.block_until_ready(
            mlp_forward(x, params, seed=123, training=True))
        assert out_train.shape == (batch, DIMS[-1])

    print("KERNEL_OK")
</pallas_src>

<mosaic_0001>
module attributes {stable_mosaic.version = 11 : i64} {
  func.func @mlp_kernel(%arg0: i32, %arg1: memref<8x32xf32, #tpu.memory_space<vmem>>, %arg2: memref<32x256xf32, #tpu.memory_space<vmem>>, %arg3: memref<1x256xf32, #tpu.memory_space<vmem>>, %arg4: memref<256x128xf32, #tpu.memory_space<vmem>>, %arg5: memref<1x128xf32, #tpu.memory_space<vmem>>, %arg6: memref<128x128xf32, #tpu.memory_space<vmem>>, %arg7: memref<1x128xf32, #tpu.memory_space<vmem>>, %arg8: memref<128x128xf32, #tpu.memory_space<vmem>>, %arg9: memref<1x128xf32, #tpu.memory_space<vmem>>, %arg10: memref<8x128xf32, #tpu.memory_space<vmem>>) attributes {dimension_semantics = [#tpu.dimension_semantics<parallel>], iteration_bounds = array<i64: 1>, scalar_prefetch = 0 : i64, scratch_operands = 0 : i64, tpu.core_type = #tpu.core_type<tc>, window_params = [{transform_indices = @transform_0, window_bounds = array<i64: 8, 32>}, {pipeline_mode = #tpu.pipeline_mode<synchronous>, transform_indices = @transform_1, window_bounds = array<i64: 32, 256>}, {pipeline_mode = #tpu.pipeline_mode<synchronous>, transform_indices = @transform_2, window_bounds = array<i64: 1, 256>}, {pipeline_mode = #tpu.pipeline_mode<synchronous>, transform_indices = @transform_3, window_bounds = array<i64: 256, 128>}, {pipeline_mode = #tpu.pipeline_mode<synchronous>, transform_indices = @transform_4, window_bounds = array<i64: 1, 128>}, {pipeline_mode = #tpu.pipeline_mode<synchronous>, transform_indices = @transform_5, window_bounds = array<i64: 128, 128>}, {pipeline_mode = #tpu.pipeline_mode<synchronous>, transform_indices = @transform_6, window_bounds = array<i64: 1, 128>}, {pipeline_mode = #tpu.pipeline_mode<synchronous>, transform_indices = @transform_7, window_bounds = array<i64: 128, 128>}, {pipeline_mode = #tpu.pipeline_mode<synchronous>, transform_indices = @transform_8, window_bounds = array<i64: 1, 128>}, {transform_indices = @transform_9, window_bounds = array<i64: 8, 128>}]} {
    %c0 = arith.constant 0 : index
    %c0_0 = arith.constant 0 : index
    %0 = vector.load %arg1[%c0, %c0_0] : memref<8x32xf32, #tpu.memory_space<vmem>>, vector<8x32xf32>
    %c0_1 = arith.constant 0 : index
    %c0_2 = arith.constant 0 : index
    %1 = vector.load %arg2[%c0_1, %c0_2] : memref<32x256xf32, #tpu.memory_space<vmem>>, vector<32x256xf32>
    %cst = arith.constant dense<0.000000e+00> : vector<8x256xf32>
    %2 = tpu.matmul %0, %1, %cst {dimension_numbers = #tpu.dot_dimension_numbers<[1], [0], [0], [1], [0, 0, 1, 1], [], []>} : vector<8x32xf32>, vector<32x256xf32>, vector<8x256xf32> -> vector<8x256xf32>
    %c0_3 = arith.constant 0 : index
    %c0_4 = arith.constant 0 : index
    %3 = vector.load %arg3[%c0_3, %c0_4] : memref<1x256xf32, #tpu.memory_space<vmem>>, vector<1x256xf32>
    %4 = vector.broadcast %3 : vector<1x256xf32> to vector<8x256xf32>
    %5 = arith.addf %2, %4 : vector<8x256xf32>
    %cst_5 = arith.constant 0.000000e+00 : f32
    %6 = vector.broadcast %cst_5 : f32 to vector<8x256xf32>
    %7 = arith.maximumf %5, %6 : vector<8x256xf32>
    %c0_6 = arith.constant 0 : index
    %c0_7 = arith.constant 0 : index
    %8 = vector.load %arg4[%c0_6, %c0_7] : memref<256x128xf32, #tpu.memory_space<vmem>>, vector<256x128xf32>
    %cst_8 = arith.constant dense<0.000000e+00> : vector<8x128xf32>
    %9 = tpu.matmul %7, %8, %cst_8 {dimension_numbers = #tpu.dot_dimension_numbers<[1], [0], [0], [1], [0, 0, 1, 1], [], []>} : vector<8x256xf32>, vector<256x128xf32>, vector<8x128xf32> -> vector<8x128xf32>
    %c0_9 = arith.constant 0 : index
    %c0_10 = arith.constant 0 : index
    %10 = vector.load %arg5[%c0_9, %c0_10] : memref<1x128xf32, #tpu.memory_space<vmem>>, vector<1x128xf32>
    %11 = vector.broadcast %10 : vector<1x128xf32> to vector<8x128xf32>
    %12 = arith.addf %9, %11 : vector<8x128xf32>
    %cst_11 = arith.constant 0.000000e+00 : f32
    %13 = vector.broadcast %cst_11 : f32 to vector<8x128xf32>
    %14 = arith.maximumf %12, %13 : vector<8x128xf32>
    %c0_12 = arith.constant 0 : index
    %c0_13 = arith.constant 0 : index
    %15 = vector.load %arg6[%c0_12, %c0_13] : memref<128x128xf32, #tpu.memory_space<vmem>>, vector<128x128xf32>
    %cst_14 = arith.constant dense<0.000000e+00> : vector<8x128xf32>
    %16 = tpu.matmul %14, %15, %cst_14 {dimension_numbers = #tpu.dot_dimension_numbers<[1], [0], [0], [1], [0, 0, 1, 1], [], []>} : vector<8x128xf32>, vector<128x128xf32>, vector<8x128xf32> -> vector<8x128xf32>
    %c0_15 = arith.constant 0 : index
    %c0_16 = arith.constant 0 : index
    %17 = vector.load %arg7[%c0_15, %c0_16] : memref<1x128xf32, #tpu.memory_space<vmem>>, vector<1x128xf32>
    %18 = vector.broadcast %17 : vector<1x128xf32> to vector<8x128xf32>
    %19 = arith.addf %16, %18 : vector<8x128xf32>
    %cst_17 = arith.constant 0.000000e+00 : f32
    %20 = vector.broadcast %cst_17 : f32 to vector<8x128xf32>
    %21 = arith.maximumf %19, %20 : vector<8x128xf32>
    %c0_18 = arith.constant 0 : index
    %c0_19 = arith.constant 0 : index
    %22 = vector.load %arg8[%c0_18, %c0_19] : memref<128x128xf32, #tpu.memory_space<vmem>>, vector<128x128xf32>
    %cst_20 = arith.constant dense<0.000000e+00> : vector<8x128xf32>
    %23 = tpu.matmul %21, %22, %cst_20 {dimension_numbers = #tpu.dot_dimension_numbers<[1], [0], [0], [1], [0, 0, 1, 1], [], []>} : vector<8x128xf32>, vector<128x128xf32>, vector<8x128xf32> -> vector<8x128xf32>
    %c0_21 = arith.constant 0 : index
    %c0_22 = arith.constant 0 : index
    %24 = vector.load %arg9[%c0_21, %c0_22] : memref<1x128xf32, #tpu.memory_space<vmem>>, vector<1x128xf32>
    %25 = vector.broadcast %24 : vector<1x128xf32> to vector<8x128xf32>
    %26 = arith.addf %23, %25 : vector<8x128xf32>
    %cst_23 = arith.constant 0.000000e+00 : f32
    %27 = vector.broadcast %cst_23 : f32 to vector<8x128xf32>
    %28 = arith.maximumf %26, %27 : vector<8x128xf32>
    %c0_24 = arith.constant 0 : index
    %c0_25 = arith.constant 0 : index
    %29 = vector.load %arg10[%c0_24, %c0_25] : memref<8x128xf32, #tpu.memory_space<vmem>>, vector<8x128xf32>
    tpu.vector_store %arg10[%c0_24, %c0_25], %28 {strides = array<i32>} : memref<8x128xf32, #tpu.memory_space<vmem>>, vector<8x128xf32>,
    return
  }
  func.func @transform_0(%arg0: i32) -> (i32, i32) {
    %c0_i32 = arith.constant 0 : i32
    %c0_i32_0 = arith.constant 0 : i32
    return %arg0, %c0_i32 : i32, i32
  }
  func.func @transform_1(%arg0: i32) -> (i32, i32) {
    %c0_i32 = arith.constant 0 : i32
    %c0_i32_0 = arith.constant 0 : i32
    %c0_i32_1 = arith.constant 0 : i32
    return %c0_i32, %c0_i32_0 : i32, i32
  }
  func.func @transform_2(%arg0: i32) -> (i32, i32) {
    %c0_i32 = arith.constant 0 : i32
    %c0_i32_0 = arith.constant 0 : i32
    %c0_i32_1 = arith.constant 0 : i32
    return %c0_i32, %c0_i32_0 : i32, i32
  }
  func.func @transform_3(%arg0: i32) -> (i32, i32) {
    %c0_i32 = arith.constant 0 : i32
    %c0_i32_0 = arith.constant 0 : i32
    %c0_i32_1 = arith.constant 0 : i32
    return %c0_i32, %c0_i32_0 : i32, i32
  }
  func.func @transform_4(%arg0: i32) -> (i32, i32) {
    %c0_i32 = arith.constant 0 : i32
    %c0_i32_0 = arith.constant 0 : i32
    %c0_i32_1 = arith.constant 0 : i32
    return %c0_i32, %c0_i32_0 : i32, i32
  }
  func.func @transform_5(%arg0: i32) -> (i32, i32) {
    %c0_i32 = arith.constant 0 : i32
    %c0_i32_0 = arith.constant 0 : i32
    %c0_i32_1 = arith.constant 0 : i32
    return %c0_i32, %c0_i32_0 : i32, i32
  }
  func.func @transform_6(%arg0: i32) -> (i32, i32) {
    %c0_i32 = arith.constant 0 : i32
    %c0_i32_0 = arith.constant 0 : i32
    %c0_i32_1 = arith.constant 0 : i32
    return %c0_i32, %c0_i32_0 : i32, i32
  }
  func.func @transform_7(%arg0: i32) -> (i32, i32) {
    %c0_i32 = arith.constant 0 : i32
    %c0_i32_0 = arith.constant 0 : i32
    %c0_i32_1 = arith.constant 0 : i32
    return %c0_i32, %c0_i32_0 : i32, i32
  }
  func.func @transform_8(%arg0: i32) -> (i32, i32) {
    %c0_i32 = arith.constant 0 : i32
    %c0_i32_0 = arith.constant 0 : i32
    %c0_i32_1 = arith.constant 0 : i32
    return %c0_i32, %c0_i32_0 : i32, i32
  }
  func.func @transform_9(%arg0: i32) -> (i32, i32) {
    %c0_i32 = arith.constant 0 : i32
    %c0_i32_0 = arith.constant 0 : i32
    return %arg0, %c0_i32 : i32, i32
  }
}

</mosaic_0001>

<llo_original>
// kernel: tpu_custom_call.1
$region0: #{tpu_custom_call.1}
  #allocation0 [shape = 'u32[]', space=smem, size = 0x4, offset = 0x4, fixed_abs, tag = 'smem constant byte address 0x4 - core index']
  #allocation1 [shape = 'u32[72,128]{1,0:T(1,128)}', space=vmem, size = 0x9000, scoped, tag = 'internal scratch']
  %s0 = inlined_call_operand.hbm [shape: f32[8,32], index: 0, kind: input, shape index: {}]
  %s1 = inlined_call_operand.hbm [shape: f32[32,256], index: 1, kind: input, shape index: {}]
  %s2 = inlined_call_operand.hbm [shape: f32[1,256], index: 2, kind: input, shape index: {}]
  %s3 = inlined_call_operand.hbm [shape: f32[256,128], index: 3, kind: input, shape index: {}]
  %s4 = inlined_call_operand.vmem [shape: f32[1,128], index: 4, kind: input, shape index: {}]
  %s5 = inlined_call_operand.hbm [shape: f32[128,128], index: 5, kind: input, shape index: {}]
  %s6 = inlined_call_operand.vmem [shape: f32[1,128], index: 6, kind: input, shape index: {}]
  %s7 = inlined_call_operand.hbm [shape: f32[128,128], index: 7, kind: input, shape index: {}]
  %s8 = inlined_call_operand.vmem [shape: f32[1,128], index: 8, kind: input, shape index: {}]
  %s9 = inlined_call_operand.hbm [shape: f32[8,128], index: 9, kind: output, shape index: {}]
  %s10 = sld [smem:[#allocation0]]
  $region70: #{tpu_custom_call.1} parent=0
    _
  %s12 = ssub.s32 1, %s10
  %s13 = scalar_select 0, %s12, %s10
  $region1: #{tpu_custom_call.1} parent=0
    #allocation2 [shape = 'u8[4096]{0}', space=vmem, size = 0x1000, scoped, tag = 'input window, operand 0, single buffered']
    #allocation3 [shape = 's32[1]{0}', space=sflag, size = 0x4, scoped, tag = 'scoped memory for tpu_custom_call.1']
    #allocation4 [shape = 's32[1]{0}', space=sflag, size = 0x4, scoped, tag = 'scoped memory for tpu_custom_call.1']
    #allocation5 [shape = 'u8[32768]{0}', space=vmem, size = 0x8000, scoped, tag = 'input window, operand 1, single buffered']
    #allocation6 [shape = 's32[1]{0}', space=sflag, size = 0x4, scoped, tag = 'scoped memory for tpu_custom_call.1']
    #allocation7 [shape = 'u8[1024]{0}', space=vmem, size = 0x400, scoped, tag = 'input window, operand 2, single buffered']
    #allocation8 [shape = 'u8[131072]{0}', space=vmem, size = 0x20000, scoped, tag = 'input window, operand 3, single buffered']
    #allocation9 [shape = 's32[1]{0}', space=sflag, size = 0x4, scoped, tag = 'scoped memory for tpu_custom_call.1']
    #allocation10 [shape = 'u8[65536]{0}', space=vmem, size = 0x10000, scoped, tag = 'input window, operand 5, single buffered']
    #allocation11 [shape = 'u8[65536]{0}', space=vmem, size = 0x10000, scoped, tag = 'input window, operand 7, single buffered']
    #allocation12 [shape = 's32[1]{0}', space=sflag, size = 0x4, scoped, tag = 'scoped memory for tpu_custom_call.1']
    #allocation13 [shape = 'u8[4096]{0}', space=vmem, size = 0x1000, scoped, tag = 'output window, operand 0, single buffered']
    %14 = vsyncpa [#allocation3], 0
    %15 = vsyncpa [#allocation6], 0
    %16 = vsyncpa [#allocation9], 0
    %17 = vsyncpa [#allocation12], 0
    %18 = vsyncpa [#allocation4], 0
    // Predicated region
    $region2: #{tpu_custom_call.1} parent=1 // pred_check
      _
    $region3: #{tpu_custom_call.1} parent=1 // pred_check_branch
      %20 = sbr.rel (0) target = $region5
    $region4: #{tpu_custom_call.1} parent=1 // pred_region
      %22 = vsyncadd [#allocation3], 0
      %s24 = sshll.u32 %s0, 4
      %s25 = int_to_ptr.hbm [resolvable:$true] %s24
      %s26 = sshll.u32 [#allocation2], 4
      %s27 = int_to_ptr.vmem [resolvable:$true] %s26
      %29 = dma.hbm_to_vmem [thread:$0]  %s25, 128, %s27, [#allocation3]
    $region5: #{tpu_custom_call.1} parent=1 // pred_fallthru
      _
    // Predicated region
    $region6: #{tpu_custom_call.1} parent=1 // pred_check
      _
    $region7: #{tpu_custom_call.1} parent=1 // pred_check_branch
      %31 = sbr.rel (0) target = $region9
    $region8: #{tpu_custom_call.1} parent=1 // pred_region
      %33 = vsyncadd [#allocation6], 0
      %s34 = sshll.u32 %s1, 4
      %s35 = int_to_ptr.hbm [resolvable:$true] %s34
      %s36 = sshll.u32 [#allocation5], 4
      %s37 = int_to_ptr.vmem [resolvable:$true] %s36
      %42 = dma.hbm_to_vmem [thread:$0]  %s35, 1024, %s37, [#allocation6], 256, 256, 16
    $region9: #{tpu_custom_call.1} parent=1 // pred_fallthru
      _
    // Predicated region
    $region10: #{tpu_custom_call.1} parent=1 // pred_check
      _
    $region11: #{tpu_custom_call.1} parent=1 // pred_check_branch
      %44 = sbr.rel (0) target = $region13
    $region12: #{tpu_custom_call.1} parent=1 // pred_region
      %46 = vsyncadd [#allocation6], 0
      %s48 = sshll.u32 %s2, 4
      %s49 = int_to_ptr.hbm [resolvable:$true] %s48
      %s50 = sshll.u32 [#allocation7], 4
      %s51 = int_to_ptr.vmem [resolvable:$true] %s50
      %53 = dma.hbm_to_vmem [thread:$0]  %s49, 32, %s51, [#allocation6]
    $region13: #{tpu_custom_call.1} parent=1 // pred_fallthru
      _
    // Predicated region
    $region14: #{tpu_custom_call.1} parent=1 // pred_check
      _
    $region15: #{tpu_custom_call.1} parent=1 // pred_check_branch
      %55 = sbr.rel (0) target = $region17
    $region16: #{tpu_custom_call.1} parent=1 // pred_region
      %57 = vsyncadd [#allocation9], 0
      %s58 = sshll.u32 %s3, 4
      %s59 = int_to_ptr.hbm [resolvable:$true] %s58
      %s60 = sshll.u32 [#allocation8], 4
      %s61 = int_to_ptr.vmem [resolvable:$true] %s60
      %66 = dma.hbm_to_vmem [thread:$0]  %s59, 4096, %s61, [#allocation9], 128, 128, 8
    $region17: #{tpu_custom_call.1} parent=1 // pred_fallthru
      _
    // Predicated region
    $region18: #{tpu_custom_call.1} parent=1 // pred_check
      _
    $region19: #{tpu_custom_call.1} parent=1 // pred_check_branch
      %68 = sbr.rel (0) target = $region21
    $region20: #{tpu_custom_call.1} parent=1 // pred_region
      _
    $region21: #{tpu_custom_call.1} parent=1 // pred_fallthru
      _
    // Predicated region
    $region22: #{tpu_custom_call.1} parent=1 // pred_check
      _
    $region23: #{tpu_custom_call.1} parent=1 // pred_check_branch
      %70 = sbr.rel (0) target = $region25
    $region24: #{tpu_custom_call.1} parent=1 // pred_region
      %72 = vsyncadd [#allocation9], 0
      %s73 = sshll.u32 %s5, 4
      %s74 = int_to_ptr.hbm [resolvable:$true] %s73
      %s75 = sshll.u32 [#allocation10], 4
      %s76 = int_to_ptr.vmem [resolvable:$true] %s75
      %81 = dma.hbm_to_vmem [thread:$0]  %s74, 2048, %s76, [#allocation9], 128, 128, 8
    $region25: #{tpu_custom_call.1} parent=1 // pred_fallthru
      _
    // Predicated region
    $region26: #{tpu_custom_call.1} parent=1 // pred_check
      _
    $region27: #{tpu_custom_call.1} parent=1 // pred_check_branch
      %83 = sbr.rel (0) target = $region29
    $region28: #{tpu_custom_call.1} parent=1 // pred_region
      _
    $region29: #{tpu_custom_call.1} parent=1 // pred_fallthru
      _
    // Predicated region
    $region30: #{tpu_custom_call.1} parent=1 // pred_check
      _
    $region31: #{tpu_custom_call.1} parent=1 // pred_check_branch
      %85 = sbr.rel (0) target = $region33
    $region32: #{tpu_custom_call.1} parent=1 // pred_region
      %87 = vsyncadd [#allocation12], 0
      %s88 = sshll.u32 %s7, 4
      %s89 = int_to_ptr.hbm [resolvable:$true] %s88
      %s90 = sshll.u32 [#allocation11], 4
      %s91 = int_to_ptr.vmem [resolvable:$true] %s90
      %96 = dma.hbm_to_vmem [thread:$0]  %s89, 2048, %s91, [#allocation12], 128, 128, 8
    $region33: #{tpu_custom_call.1} parent=1 // pred_fallthru
      _
    // Predicated region
    $region34: #{tpu_custom_call.1} parent=1 // pred_check
      _
    $region35: #{tpu_custom_call.1} parent=1 // pred_check_branch
      %98 = sbr.rel (0) target = $region37
    $region36: #{tpu_custom_call.1} parent=1 // pred_region
      _
    $region37: #{tpu_custom_call.1} parent=1 // pred_fallthru
      _
    // Predicated region
    $region38: #{tpu_custom_call.1} parent=1 // pred_check
      _
    $region39: #{tpu_custom_call.1} parent=1 // pred_check_branch
      %100 = sbr.rel (0) target = $region41
    $region40: #{tpu_custom_call.1} parent=1 // pred_region
      %102 = dma.done [#allocation3], 128
    $region41: #{tpu_custom_call.1} parent=1 // pred_fallthru
      _
    // Predicated region
    $region42: #{tpu_custom_call.1} parent=1 // pred_check
      _
    $region43: #{tpu_custom_call.1} parent=1 // pred_check_branch
      %104 = sbr.rel (0) target = $region45
    $region44: #{tpu_custom_call.1} parent=1 // pred_region
      %106 = dma.done [#allocation6], 1024
    $region45: #{tpu_custom_call.1} parent=1 // pred_fallthru
      _
    // Predicated region
    $region46: #{tpu_custom_call.1} parent=1 // pred_check
      _
    $region47: #{tpu_custom_call.1} parent=1 // pred_check_branch
      %108 = sbr.rel (0) target = $region49
    $region48: #{tpu_custom_call.1} parent=1 // pred_region
      %110 = dma.done [#allocation6], 32
    $region49: #{tpu_custom_call.1} parent=1 // pred_fallthru
      _
    // Predicated region
    $region50: #{tpu_custom_call.1} parent=1 // pred_check
      _
    $region51: #{tpu_custom_call.1} parent=1 // pred_check_branch
      %112 = sbr.rel (0) target = $region53
    $region52: #{tpu_custom_call.1} parent=1 // pred_region
      %114 = dma.done [#allocation9], 4096
    $region53: #{tpu_custom_call.1} parent=1 // pred_fallthru
      _
    // Predicated region
    $region54: #{tpu_custom_call.1} parent=1 // pred_check
      _
    $region55: #{tpu_custom_call.1} parent=1 // pred_check_branch
      %116 = sbr.rel (0) target = $region57
    $region56: #{tpu_custom_call.1} parent=1 // pred_region
      %118 = dma.done [#allocation9], 2048
    $region57: #{tpu_custom_call.1} parent=1 // pred_fallthru
      _
    // Predicated region
    $region58: #{tpu_custom_call.1} parent=1 // pred_check
      _
    $region59: #{tpu_custom_call.1} parent=1 // pred_check_branch
      %120 = sbr.rel (0) target = $region61
    $region60: #{tpu_custom_call.1} parent=1 // pred_region
      %122 = dma.done [#allocation12], 2048
    $region61: #{tpu_custom_call.1} parent=1 // pred_fallthru
      _
    %v123 = vld [vmem:[#allocation2] sm:$0xff]
    %v124 = vld [vmem:[#allocation5] sm:$0xff]
    %v125 = vld [vmem:[#allocation5 + $0x8] sm:$0xff]
    %v126 = vld [vmem:[#allocation5 + $0x10] sm:$0xff]
    %v127 = vld [vmem:[#allocation5 + $0x18] sm:$0xff]
    %v128 = vld [vmem:[#allocation5 + $0x20] sm:$0xff]
    %v129 = vld [vmem:[#allocation5 + $0x28] sm:$0xff]
    %v130 = vld [vmem:[#allocation5 + $0x30] sm:$0xff]
    %v131 = vld [vmem:[#allocation5 + $0x38] sm:$0xff]
    %v132 = vld [vmem:[#allocation7] sm:$0x3]
    %v134 = vperm.slane %v132, 0
    %v135 = vperm.slane %v132, 1
    %vm138 = vcmask 261120
    %v140 = vsel %vm138, %v123, 0
    %142 = vmatpush.msra.mxu0 0.0
    %143 = vmatpush.msra.mxu0 0.0
    %144 = vmatpush.msra.mxu0 0.0
    %145 = vmatpush.msra.mxu0 0.0
    %146 = vmatpush.msra.mxu0 0.0
    %147 = vmatpush.msra.mxu0 0.0
    %148 = vmatpush.msra.mxu0 0.0
    %149 = vmatpush.msra.mxu0 0.0
    %150 = vmatpush.msra.mxu0 0.0
    %151 = vmatpush.msra.mxu0 0.0
    %152 = vmatpush.msra.mxu0 0.0
    %153 = vmatpush.msra.mxu0 0.0
    %154 = vmatpush.msra.mxu0 %v130
    %155 = vmatpush.msra.mxu0 %v128
    %156 = vmatpush.msra.mxu0 %v126
    %157 = vmatpush.msra.mxu0 %v124
    %158 = vmatmul.f32.gmra.mxu0 %v140
    %v159 = vpop.f32.mrf.mxu0
    %v160 = vadd.f32 %v134, %v159
    %161 = vdwg.mxu0
    %162 = vmatpush.msra.mxu0 0.0
    %163 = vmatpush.msra.mxu0 0.0
    %164 = vmatpush.msra.mxu0 0.0
    %165 = vmatpush.msra.mxu0 0.0
    %166 = vmatpush.msra.mxu0 0.0
    %167 = vmatpush.msra.mxu0 0.0
    %168 = vmatpush.msra.mxu0 0.0
    %169 = vmatpush.msra.mxu0 0.0
    %170 = vmatpush.msra.mxu0 0.0
    %171 = vmatpush.msra.mxu0 0.0
    %172 = vmatpush.msra.mxu0 0.0
    %173 = vmatpush.msra.mxu0 0.0
    %174 = vmatpush.msra.mxu0 %v131
    %175 = vmatpush.msra.mxu0 %v129
    %176 = vmatpush.msra.mxu0 %v127
    %177 = vmatpush.msra.mxu0 %v125
    %178 = vmatmul.f32.gmra.mxu0 %v140
    %v179 = vpop.f32.mrf.mxu0
    %v180 = vadd.f32 %v135, %v179
    %181 = vdwg.mxu0
    %v182 = vmax.f32 %v160, 0.0
    %v183 = vmax.f32 %v180, 0.0
    %v184 = vld [vmem:[#allocation8] sm:$0xff]
    %v185 = vld [vmem:[#allocation8 + $0x8] sm:$0xff]
    %v186 = vld [vmem:[#allocation8 + $0x10] sm:$0xff]
    %v187 = vld [vmem:[#allocation8 + $0x18] sm:$0xff]
    %v188 = vld [vmem:[#allocation8 + $0x20] sm:$0xff]
    %v189 = vld [vmem:[#allocation8 + $0x28] sm:$0xff]
    %v190 = vld [vmem:[#allocation8 + $0x30] sm:$0xff]
    %v191 = vld [vmem:[#allocation8 + $0x38] sm:$0xff]
    %v192 = vld [vmem:[#allocation8 + $0x40] sm:$0xff]
    %v193 = vld [vmem:[#allocation8 + $0x48] sm:$0xff]
    %v194 = vld [vmem:[#allocation8 + $0x50] sm:$0xff]
    %v195 = vld [vmem:[#allocation8 + $0x58] sm:$0xff]
    %v196 = vld [vmem:[#allocation8 + $0x60] sm:$0xff]
    %v197 = vld [vmem:[#allocation8 + $0x68] sm:$0xff]
    %v198 = vld [vmem:[#allocation8 + $0x70] sm:$0xff]
    %v199 = vld [vmem:[#allocation8 + $0x78] sm:$0xff]
    %v200 = vld [vmem:[#allocation8 + $0x80] sm:$0xff]
    %v201 = vld [vmem:[#allocation8 + $0x88] sm:$0xff]
    %v202 = vld [vmem:[#allocation8 + $0x90] sm:$0xff]
    %v203 = vld [vmem:[#allocation8 + $0x98] sm:$0xff]
    %v204 = vld [vmem:[#allocation8 + $0xa0] sm:$0xff]
    %v205 = vld [vmem:[#allocation8 + $0xa8] sm:$0xff]
    %v206 = vld [vmem:[#allocation8 + $0xb0] sm:$0xff]
    %v207 = vld [vmem:[#allocation8 + $0xb8] sm:$0xff]
    %v208 = vld [vmem:[#allocation8 + $0xc0] sm:$0xff]
    %v209 = vld [vmem:[#allocation8 + $0xc8] sm:$0xff]
    %v210 = vld [vmem:[#allocation8 + $0xd0] sm:$0xff]
    %v211 = vld [vmem:[#allocation8 + $0xd8] sm:$0xff]
    %v212 = vld [vmem:[#allocation8 + $0xe0] sm:$0xff]
    %v213 = vld [vmem:[#allocation8 + $0xe8] sm:$0xff]
    %v214 = vld [vmem:[#allocation8 + $0xf0] sm:$0xff]
    %v215 = vld [vmem:[#allocation8 + $0xf8] sm:$0xff]
    %v216 = vld [vmem:[%s4] sm:$0x1]
    %v218 = vperm.slane %v216, 0
    %220 = vmatpush.msra.mxu0 %v199
    %221 = vmatpush.msra.mxu0 %v198
    %222 = vmatpush.msra.mxu0 %v197
    %223 = vmatpush.msra.mxu0 %v196
    %224 = vmatpush.msra.mxu0 %v195
    %225 = vmatpush.msra.mxu0 %v194
    %226 = vmatpush.msra.mxu0 %v193
    %227 = vmatpush.msra.mxu0 %v192
    %228 = vmatpush.msra.mxu0 %v191
    %229 = vmatpush.msra.mxu0 %v190
    %230 = vmatpush.msra.mxu0 %v189
    %231 = vmatpush.msra.mxu0 %v188
    %232 = vmatpush.msra.mxu0 %v187
    %233 = vmatpush.msra.mxu0 %v186
    %234 = vmatpush.msra.mxu0 %v185
    %235 = vmatpush.msra.mxu0 %v184
    %236 = vmatmul.f32.gmra.mxu0 %v182
    %v237 = vpop.f32.mrf.mxu0
    %v238 = vadd.f32 %v218, %v237
    %239 = vdwg.mxu0
    %240 = vmatpush.msra.mxu0 %v215
    %241 = vmatpush.msra.mxu0 %v214
    %242 = vmatpush.msra.mxu0 %v213
    %243 = vmatpush.msra.mxu0 %v212
    %244 = vmatpush.msra.mxu0 %v211
    %245 = vmatpush.msra.mxu0 %v210
    %246 = vmatpush.msra.mxu0 %v209
    %247 = vmatpush.msra.mxu0 %v208
    %248 = vmatpush.msra.mxu0 %v207
    %249 = vmatpush.msra.mxu0 %v206
    %250 = vmatpush.msra.mxu0 %v205
    %251 = vmatpush.msra.mxu0 %v204
    %252 = vmatpush.msra.mxu0 %v203
    %253 = vmatpush.msra.mxu0 %v202
    %254 = vmatpush.msra.mxu0 %v201
    %255 = vmatpush.msra.mxu0 %v200
    %256 = vmatmul.f32.gmra.mxu0 %v183
    %v257 = vpop.f32.mrf.mxu0
    %v258 = vadd.f32 %v238, %v257
    %259 = vdwg.mxu0
    %v260 = vmax.f32 %v258, 0.0
    %v261 = vld [vmem:[#allocation10] sm:$0xff]
    %v262 = vld [vmem:[#allocation10 + $0x8] sm:$0xff]
    %v263 = vld [vmem:[#allocation10 + $0x10] sm:$0xff]
    %v264 = vld [vmem:[#allocation10 + $0x18] sm:$0xff]
    %v265 = vld [vmem:[#allocation10 + $0x20] sm:$0xff]
    %v266 = vld [vmem:[#allocation10 + $0x28] sm:$0xff]
    %v267 = vld [vmem:[#allocation10 + $0x30] sm:$0xff]
    %v268 = vld [vmem:[#allocation10 + $0x38] sm:$0xff]
    %v269 = vld [vmem:[#allocation10 + $0x40] sm:$0xff]
    %v270 = vld [vmem:[#allocation10 + $0x48] sm:$0xff]
    %v271 = vld [vmem:[#allocation10 + $0x50] sm:$0xff]
    %v272 = vld [vmem:[#allocation10 + $0x58] sm:$0xff]
    %v273 = vld [vmem:[#allocation10 + $0x60] sm:$0xff]
    %v274 = vld [vmem:[#allocation10 + $0x68] sm:$0xff]
    %v275 = vld [vmem:[#allocation10 + $0x70] sm:$0xff]
    %v276 = vld [vmem:[#allocation10 + $0x78] sm:$0xff]
    %v277 = vld [vmem:[%s6] sm:$0x1]
    %v279 = vperm.slane %v277, 0
    %281 = vmatpush.msra.mxu0 %v276
    %282 = vmatpush.msra.mxu0 %v275
    %283 = vmatpush.msra.mxu0 %v274
    %284 = vmatpush.msra.mxu0 %v273
    %285 = vmatpush.msra.mxu0 %v272
    %286 = vmatpush.msra.mxu0 %v271
    %287 = vmatpush.msra.mxu0 %v270
    %288 = vmatpush.msra.mxu0 %v269
    %289 = vmatpush.msra.mxu0 %v268
    %290 = vmatpush.msra.mxu0 %v267
    %291 = vmatpush.msra.mxu0 %v266
    %292 = vmatpush.msra.mxu0 %v265
    %293 = vmatpush.msra.mxu0 %v264
    %294 = vmatpush.msra.mxu0 %v263
    %295 = vmatpush.msra.mxu0 %v262
    %296 = vmatpush.msra.mxu0 %v261
    %297 = vmatmul.f32.gmra.mxu0 %v260
    %v298 = vpop.f32.mrf.mxu0
    %v299 = vadd.f32 %v279, %v298
    %300 = vdwg.mxu0
    %v301 = vmax.f32 %v299, 0.0
    %v302 = vld [vmem:[#allocation11] sm:$0xff]
    %v303 = vld [vmem:[#allocation11 + $0x8] sm:$0xff]
    %v304 = vld [vmem:[#allocation11 + $0x10] sm:$0xff]
    %v305 = vld [vmem:[#allocation11 + $0x18] sm:$0xff]
    %v306 = vld [vmem:[#allocation11 + $0x20] sm:$0xff]
    %v307 = vld [vmem:[#allocation11 + $0x28] sm:$0xff]
    %v308 = vld [vmem:[#allocation11 + $0x30] sm:$0xff]
    %v309 = vld [vmem:[#allocation11 + $0x38] sm:$0xff]
    %v310 = vld [vmem:[#allocation11 + $0x40] sm:$0xff]
    %v311 = vld [vmem:[#allocation11 + $0x48] sm:$0xff]
    %v312 = vld [vmem:[#allocation11 + $0x50] sm:$0xff]
    %v313 = vld [vmem:[#allocation11 + $0x58] sm:$0xff]
    %v314 = vld [vmem:[#allocation11 + $0x60] sm:$0xff]
    %v315 = vld [vmem:[#allocation11 + $0x68] sm:$0xff]
    %v316 = vld [vmem:[#allocation11 + $0x70] sm:$0xff]
    %v317 = vld [vmem:[#allocation11 + $0x78] sm:$0xff]
    %v318 = vld [vmem:[%s8] sm:$0x1]
    %v320 = vperm.slane %v318, 0
    %322 = vmatpush.msra.mxu0 %v317
    %323 = vmatpush.msra.mxu0 %v316
    %324 = vmatpush.msra.mxu0 %v315
    %325 = vmatpush.msra.mxu0 %v314
    %326 = vmatpush.msra.mxu0 %v313
    %327 = vmatpush.msra.mxu0 %v312
    %328 = vmatpush.msra.mxu0 %v311
    %329 = vmatpush.msra.mxu0 %v310
    %330 = vmatpush.msra.mxu0 %v309
    %331 = vmatpush.msra.mxu0 %v308
    %332 = vmatpush.msra.mxu0 %v307
    %333 = vmatpush.msra.mxu0 %v306
    %334 = vmatpush.msra.mxu0 %v305
    %335 = vmatpush.msra.mxu0 %v304
    %336 = vmatpush.msra.mxu0 %v303
    %337 = vmatpush.msra.mxu0 %v302
    %338 = vmatmul.f32.gmra.mxu0 %v301
    %v339 = vpop.f32.mrf.mxu0
    %v340 = vadd.f32 %v320, %v339
    %341 = vdwg.mxu0
    %v342 = vmax.f32 %v340, 0.0
    %343 = vst [vmem:[#allocation13] sm:$0xff] %v342
    // Predicated region
    $region62: #{tpu_custom_call.1} parent=1 // pred_check
      _
    $region63: #{tpu_custom_call.1} parent=1 // pred_check_branch
      %345 = sbr.rel (0) target = $region65
    $region64: #{tpu_custom_call.1} parent=1 // pred_region
      %347 = vsyncadd [#allocation4], 0
      %s349 = sshll.u32 [#allocation13], 4
      %s350 = int_to_ptr.vmem [resolvable:$true] %s349
      %s351 = sshll.u32 %s9, 4
      %s352 = int_to_ptr.hbm [resolvable:$true] %s351
      %354 = dma.vmem_to_hbm [thread:$0]  %s350, 128, %s352, [#allocation4]
    $region65: #{tpu_custom_call.1} parent=1 // pred_fallthru
      _
    // Predicated region
    $region66: #{tpu_custom_call.1} parent=1 // pred_check
      _
    $region67: #{tpu_custom_call.1} parent=1 // pred_check_branch
      %356 = sbr.rel (0) target = $region69
    $region68: #{tpu_custom_call.1} parent=1 // pred_region
      %358 = dma.done [#allocation4], 128
    $region69: #{tpu_custom_call.1} parent=1 // pred_fallthru
      _
    %359 = vsyncpa [#allocation3], 1
    %360 = vsyncpa [#allocation6], 1
    %361 = vsyncpa [#allocation9], 1
    %362 = vsyncpa [#allocation12], 1
    %363 = vsyncpa [#allocation4], 1

</llo_original>
